<compile_context>
chip_gen: v5e
topology: v5e:2x2
jax: 0.10.0
libtpu: 0.0.40
codegen_flags: <defaults>
</compile_context>

<pallas_src>
import functools

import jax
import jax.numpy as jnp
from jax.experimental import pallas as pl
from jax.experimental.pallas import tpu as pltpu


_LANE = 128        # lane (last-dim) tile
_SUBLANE_BF16 = 16  # bf16 sublane tile (activations/intermediates are bf16)


def _round_up(x, m):
    return ((x + m - 1) // m) * m


def _vmem_capacity_bytes():
    """Per-TensorCore VMEM capacity; conservative fallback = v7x's 64 MiB."""
    try:
        return int(pltpu.get_tpu_info().vmem_capacity_bytes)
    except Exception:
        return 64 << 20


# --------------------------------------------------------------------------- #
# Fused path: all layer weights VMEM-resident, batch-tiled grid.
# --------------------------------------------------------------------------- #
def _mlp_kernel(*refs, num_layers):
    """Fused MLP forward for one batch tile.

    refs = (x_ref, w0_ref, b0_ref, ..., w{L-1}_ref, b{L-1}_ref, out_ref)
    x/w refs hold bf16; matmuls accumulate in f32 on the MXU; bias/ReLU in f32.
    Eval-mode dropout == identity.
    """
    x_ref = refs[0]
    out_ref = refs[-1]

    h = x_ref[...]                               # bf16 [TM, D0p]
    acc = None
    for i in range(num_layers):
        w_ref = refs[1 + 2 * i]
        b_ref = refs[2 + 2 * i]
        acc = jnp.dot(h, w_ref[...], preferred_element_type=jnp.float32)
        acc = acc + b_ref[...]                   # (1, Np) broadcast over batch tile
        if i < num_layers - 1:
            acc = jnp.maximum(acc, 0.0)          # ReLU (+ eval dropout = identity)
            h = acc.astype(jnp.bfloat16)         # bf16 operand for next MXU matmul
    out_ref[...] = acc.astype(out_ref.dtype)


def _choose_block_m(B, dims_p, resident_bytes, out_itemsize, vmem_cap):
    """Pick the batch tile: big (amortize ~0.35us/step), VMEM-bounded, >=2 tiles on v7x."""
    max_dim = max(dims_p)
    # per-row VMEM cost: double-buffered x/out tiles + f32 acc + bf16 h working set.
    per_row = 2 * (dims_p[0] * 2 + dims_p[-1] * out_itemsize) + 6 * max_dim + 2 * max_dim
    budget = int(0.75 * vmem_cap) - resident_bytes - (2 << 20)
    cap_rows = max(_SUBLANE_BF16, budget // max(per_row, 1)) if budget > 0 else _SUBLANE_BF16

    bm = min(1024, cap_rows)
    if B >= 32:
        # Keep at least two batch tiles so megacore (v7x, 2 TCs) has work to shard.
        bm = min(bm, _round_up(-(-B // 2), _SUBLANE_BF16))
    bm = min(bm, _round_up(B, _SUBLANE_BF16))
    bm = max(_SUBLANE_BF16, (bm // _SUBLANE_BF16) * _SUBLANE_BF16)
    return bm


def _fused_forward(x, weights_t, biases, dims_p, out_dtype, block_m, vmem_cap):
    num_layers = len(weights_t)
    B, d_in = x.shape
    out_itemsize = jnp.dtype(out_dtype).itemsize

    weight_bytes = sum(dims_p[i] * dims_p[i + 1] * 2 for i in range(num_layers))  # bf16
    bias_bytes = sum(dims_p[i + 1] * 4 for i in range(num_layers))                # f32
    resident = weight_bytes + bias_bytes                                          # single-buffered

    if block_m is None:
        block_m = _choose_block_m(B, dims_p, resident, out_itemsize, vmem_cap)
    block_m = max(_SUBLANE_BF16, _round_up(block_m, _SUBLANE_BF16))
    B_p = _round_up(B, block_m)
    grid_m = B_p // block_m

    # x: zero-pad and cast to bf16 (MXU operand); zero lanes stay inert downstream.
    x_p = jnp.zeros((B_p, dims_p[0]), jnp.bfloat16).at[:B, :d_in].set(
        x.astype(jnp.bfloat16))

    operands = [x_p]
    in_specs = [pl.BlockSpec((block_m, dims_p[0]), lambda i: (i, 0))]

    for li, (w, b) in enumerate(zip(weights_t, biases)):
        k, n = int(w.shape[0]), int(w.shape[1])
        k_p, n_p = dims_p[li], dims_p[li + 1]
        w_p = jnp.zeros((k_p, n_p), jnp.bfloat16).at[:k, :n].set(w.astype(jnp.bfloat16))
        b2 = jnp.reshape(b, (1, -1)).astype(jnp.float32)
        b_p = jnp.zeros((1, n_p), jnp.float32).at[:, :n].set(b2)
        operands += [w_p, b_p]
        # Resident across all batch tiles; block never changes -> single buffer.
        in_specs.append(pl.BlockSpec((k_p, n_p), lambda i: (0, 0),
                                     pipeline_mode=pl.Buffered(1)))
        in_specs.append(pl.BlockSpec((1, n_p), lambda i: (0, 0),
                                     pipeline_mode=pl.Buffered(1)))

    out_spec = pl.BlockSpec((block_m, dims_p[-1]), lambda i: (i, 0))

    # ---------- device-aware VMEM budget (single weight copy; default scoped limit is small) ----
    io_tile_bytes = 2 * block_m * (dims_p[0] * 2 + dims_p[-1] * out_itemsize)  # dbl-buffered x/out
    act_bytes = 2 * block_m * max(dims_p) * 6                                  # f32 acc + bf16 h
    vmem_limit = resident + io_tile_bytes + act_bytes + (4 << 20)
    vmem_limit = int(min(vmem_limit, vmem_cap - (4 << 20)))
    vmem_limit = max(vmem_limit, 16 << 20)

    flops = 2 * B_p * sum(dims_p[i] * dims_p[i + 1] for i in range(num_layers))
    bytes_accessed = (B_p * dims_p[0] * 2 + weight_bytes + bias_bytes
                      + B_p * dims_p[-1] * out_itemsize)
    cost = pl.CostEstimate(flops=flops, transcendentals=0,
                           bytes_accessed=bytes_accessed)

    kernel = functools.partial(_mlp_kernel, num_layers=num_layers)

    out_p = pl.pallas_call(
        kernel,
        out_shape=jax.ShapeDtypeStruct((B_p, dims_p[-1]), out_dtype),
        grid=(grid_m,),
        in_specs=in_specs,
        out_specs=out_spec,
        compiler_params=pltpu.CompilerParams(
            # Batch tiles are independent -> shard across TensorCores on v7x.
            dimension_semantics=("parallel",),
            vmem_limit_bytes=vmem_limit,
        ),
        cost_estimate=cost,
    )(*operands)

    return out_p[:B, :int(weights_t[-1].shape[1])]


# --------------------------------------------------------------------------- #
# Streaming fallback: per-layer tiled matmul (weights streamed through VMEM).
# Used when the resident-weight footprint would not fit (e.g. v7x's 64 MiB).
# --------------------------------------------------------------------------- #
def _linear_kernel(x_ref, w_ref, b_ref, o_ref, acc_ref, *, relu):
    k = pl.program_id(2)

    @pl.when(k == 0)
    def _():
        acc_ref[...] = jnp.zeros_like(acc_ref)

    acc_ref[...] += jnp.dot(x_ref[...], w_ref[...],
                            preferred_element_type=jnp.float32)

    @pl.when(k == pl.num_programs(2) - 1)
    def _():
        y = acc_ref[...] + b_ref[...]
        if relu:
            y = jnp.maximum(y, 0.0)
        o_ref[...] = y.astype(o_ref.dtype)


def _pick_tile(dim_p):
    for t in (512, 256, 128):
        if dim_p % t == 0:
            return t
    return dim_p


def _stream_forward(x, weights_t, biases, dims_p, out_dtype):
    num_layers = len(weights_t)
    B, d_in = x.shape
    tm = min(256, _round_up(B, _SUBLANE_BF16))
    B_p = _round_up(B, tm)

    h = jnp.zeros((B_p, dims_p[0]), jnp.bfloat16).at[:B, :d_in].set(
        x.astype(jnp.bfloat16))

    for li, (w, b) in enumerate(zip(weights_t, biases)):
        k, n = int(w.shape[0]), int(w.shape[1])
        k_p, n_p = dims_p[li], dims_p[li + 1]
        relu = li < num_layers - 1
        layer_dtype = jnp.bfloat16 if relu else out_dtype

        w_p = jnp.zeros((k_p, n_p), jnp.bfloat16).at[:k, :n].set(w.astype(jnp.bfloat16))
        b_p = jnp.zeros((1, n_p), jnp.float32).at[:, :n].set(
            jnp.reshape(b, (1, -1)).astype(jnp.float32))

        tk, tn = _pick_tile(k_p), _pick_tile(n_p)
        h = pl.pallas_call(
            functools.partial(_linear_kernel, relu=relu),
            out_shape=jax.ShapeDtypeStruct((B_p, n_p), layer_dtype),
            grid=(B_p // tm, n_p // tn, k_p // tk),
            in_specs=[pl.BlockSpec((tm, tk), lambda i, j, kk: (i, kk)),
                      pl.BlockSpec((tk, tn), lambda i, j, kk: (kk, j)),
                      pl.BlockSpec((1, tn), lambda i, j, kk: (0, j))],
            out_specs=pl.BlockSpec((tm, tn), lambda i, j, kk: (i, j)),
            scratch_shapes=[pltpu.VMEM((tm, tn), jnp.float32)],
            compiler_params=pltpu.CompilerParams(
                dimension_semantics=("parallel", "parallel", "arbitrary")),
        )(h, w_p, b_p)

    return h[:B, :int(weights_t[-1].shape[1])]


# --------------------------------------------------------------------------- #
# Public entry point
# --------------------------------------------------------------------------- #
def complex_ann_forward(x, weights_t, biases, *, block_m=None,
                        out_dtype=jnp.float32, force_stream=False):
    """Run the ComplexANN forward (eval mode).

    x:         [B, input_size] float32
    weights_t: list of [in_i, out_i] arrays (PyTorch W transposed)
    biases:    list of [out_i] (or [1, out_i]) arrays
    Returns [B, output_size] in out_dtype (default float32, matching PyTorch).
    """
    num_layers = len(weights_t)
    d_in = int(x.shape[1])
    dims = [d_in] + [int(w.shape[1]) for w in weights_t]
    dims_p = [_round_up(d, _LANE) for d in dims]

    vmem_cap = _vmem_capacity_bytes()
    weight_bytes = sum(dims_p[i] * dims_p[i + 1] * 2 for i in range(num_layers))
    bias_bytes = sum(dims_p[i + 1] * 4 for i in range(num_layers))

    # Weight-streaming fallback when resident weights would not fit VMEM
    # alongside activations/I-O tiles (binds first on v7x's 64 MiB per TC).
    if force_stream or (weight_bytes + bias_bytes) > int(0.7 * vmem_cap):
        return _stream_forward(x, weights_t, biases, dims_p, out_dtype)

    return _fused_forward(x, weights_t, biases, dims_p, out_dtype, block_m, vmem_cap)


# --------------------------------------------------------------------------- #
# Params + references
# --------------------------------------------------------------------------- #
def init_params(key, input_size, hidden_sizes, output_size):
    """Deterministic init mimicking nn.Linear default (uniform(+-1/sqrt(fan_in)))."""
    sizes = [input_size] + list(hidden_sizes) + [output_size]
    weights_t, biases = [], []
    for i in range(len(sizes) - 1):
        fan_in, fan_out = sizes[i], sizes[i + 1]
        key, kw, kb = jax.random.split(key, 3)
        bound = 1.0 / jnp.sqrt(fan_in)
        # PyTorch stores W as [out, in]; keep it transposed [in, out] for the kernel.
        w_t = jax.random.uniform(kw, (fan_in, fan_out), jnp.float32, -bound, bound)
        b = jax.random.uniform(kb, (fan_out,), jnp.float32, -bound, bound)
        weights_t.append(w_t)
        biases.append(b)
    return weights_t, biases


def reference_forward_matched(x, weights_t, biases):
    """Plain-JAX reference with the kernel's numerics: bf16 operands, f32 acc,
    f32 bias/ReLU, bf16 inter-layer activations (eval-mode dropout == identity)."""
    h = x.astype(jnp.bfloat16).astype(jnp.float32)
    n = len(weights_t)
    for i, (w, b) in enumerate(zip(weights_t, biases)):
        w32 = w.astype(jnp.bfloat16).astype(jnp.float32)
        h = h @ w32 + jnp.reshape(b, (1, -1)).astype(jnp.float32)
        if i < n - 1:
            h = jnp.maximum(h, 0.0)
            h = h.astype(jnp.bfloat16).astype(jnp.float32)
    return h


def reference_forward_f32(x, weights_t, biases):
    """Pure-f32 reference of the PyTorch eval-mode forward."""
    h = x
    n = len(weights_t)
    for i, (w, b) in enumerate(zip(weights_t, biases)):
        h = h @ w + jnp.reshape(b, (1, -1))
        if i < n - 1:
            h = jnp.maximum(h, 0.0)
    return h


if __name__ == "__main__":
    # Small shapes consistent with the module: ComplexANN(32, [64, 32], 8)
    batch = 64              # B >= 32 -> block_m capped at B/2 -> 2 batch tiles (megacore path)
    input_size = 32
    hidden_sizes = [64, 32]
    output_size = 8

    key = jax.random.PRNGKey(0)
    key, kx = jax.random.split(key)
    x = jax.random.normal(kx, (batch, input_size), jnp.float32)

    weights_t, biases = init_params(key, input_size, hidden_sizes, output_size)

    ref_bf16 = reference_forward_matched(x, weights_t, biases)
    ref_f32 = reference_forward_f32(x, weights_t, biases)

    # Fused (weight-resident) path.
    out = complex_ann_forward(x, weights_t, biases)
    out = jax.block_until_ready(out)
    assert out.shape == (batch, output_size)
    assert jnp.allclose(out, ref_bf16, atol=2e-3, rtol=2e-3), "fused: mismatch vs bf16-matched ref"
    assert jnp.allclose(out, ref_f32, atol=5e-2, rtol=5e-2), "fused: mismatch vs f32 ref"

    # Weight-streaming fallback path (forced, to exercise the v7x large-model route).
    out_s = complex_ann_forward(x, weights_t, biases, force_stream=True)
    out_s = jax.block_until_ready(out_s)
    assert out_s.shape == (batch, output_size)
    assert jnp.allclose(out_s, ref_bf16, atol=2e-3, rtol=2e-3), "stream: mismatch vs bf16-matched ref"
    assert jnp.allclose(out_s, ref_f32, atol=5e-2, rtol=5e-2), "stream: mismatch vs f32 ref"

    print("KERNEL_OK")
</pallas_src>

<mosaic_0001>
module attributes {stable_mosaic.version = 11 : i64} {
  func.func @_mlp_kernel(%arg0: i32, %arg1: memref<32x128xbf16, #tpu.memory_space<vmem>>, %arg2: memref<128x128xbf16, #tpu.memory_space<vmem>>, %arg3: memref<1x128xf32, #tpu.memory_space<vmem>>, %arg4: memref<128x128xbf16, #tpu.memory_space<vmem>>, %arg5: memref<1x128xf32, #tpu.memory_space<vmem>>, %arg6: memref<128x128xbf16, #tpu.memory_space<vmem>>, %arg7: memref<1x128xf32, #tpu.memory_space<vmem>>, %arg8: memref<32x128xf32, #tpu.memory_space<vmem>>) attributes {dimension_semantics = [#tpu.dimension_semantics<parallel>], iteration_bounds = array<i64: 2>, scalar_prefetch = 0 : i64, scratch_operands = 0 : i64, tpu.core_type = #tpu.core_type<tc>, window_params = [{transform_indices = @transform_0, window_bounds = array<i64: 32, 128>}, {pipeline_mode = #tpu.pipeline_mode<synchronous>, transform_indices = @transform_1, window_bounds = array<i64: 128, 128>}, {pipeline_mode = #tpu.pipeline_mode<synchronous>, transform_indices = @transform_2, window_bounds = array<i64: 1, 128>}, {pipeline_mode = #tpu.pipeline_mode<synchronous>, transform_indices = @transform_3, window_bounds = array<i64: 128, 128>}, {pipeline_mode = #tpu.pipeline_mode<synchronous>, transform_indices = @transform_4, window_bounds = array<i64: 1, 128>}, {pipeline_mode = #tpu.pipeline_mode<synchronous>, transform_indices = @transform_5, window_bounds = array<i64: 128, 128>}, {pipeline_mode = #tpu.pipeline_mode<synchronous>, transform_indices = @transform_6, window_bounds = array<i64: 1, 128>}, {transform_indices = @transform_7, window_bounds = array<i64: 32, 128>}]} {
    %c0 = arith.constant 0 : index
    %c0_0 = arith.constant 0 : index
    %0 = vector.load %arg1[%c0, %c0_0] : memref<32x128xbf16, #tpu.memory_space<vmem>>, vector<32x128xbf16>
    %c0_1 = arith.constant 0 : index
    %c0_2 = arith.constant 0 : index
    %1 = vector.load %arg2[%c0_1, %c0_2] : memref<128x128xbf16, #tpu.memory_space<vmem>>, vector<128x128xbf16>
    %cst = arith.constant dense<0.000000e+00> : vector<32x128xf32>
    %2 = tpu.matmul %0, %1, %cst {dimension_numbers = #tpu.dot_dimension_numbers<[1], [0], [0], [1], [0, 0, 1, 1], [], []>} : vector<32x128xbf16>, vector<128x128xbf16>, vector<32x128xf32> -> vector<32x128xf32>
    %c0_3 = arith.constant 0 : index
    %c0_4 = arith.constant 0 : index
    %3 = vector.load %arg3[%c0_3, %c0_4] : memref<1x128xf32, #tpu.memory_space<vmem>>, vector<1x128xf32>
    %4 = vector.broadcast %3 : vector<1x128xf32> to vector<32x128xf32>
    %5 = arith.addf %2, %4 : vector<32x128xf32>
    %cst_5 = arith.constant 0.000000e+00 : f32
    %6 = vector.broadcast %cst_5 : f32 to vector<32x128xf32>
    %7 = arith.maximumf %5, %6 : vector<32x128xf32>
    %8 = arith.truncf %7 : vector<32x128xf32> to vector<32x128xbf16>
    %c0_6 = arith.constant 0 : index
    %c0_7 = arith.constant 0 : index
    %9 = vector.load %arg4[%c0_6, %c0_7] : memref<128x128xbf16, #tpu.memory_space<vmem>>, vector<128x128xbf16>
    %cst_8 = arith.constant dense<0.000000e+00> : vector<32x128xf32>
    %10 = tpu.matmul %8, %9, %cst_8 {dimension_numbers = #tpu.dot_dimension_numbers<[1], [0], [0], [1], [0, 0, 1, 1], [], []>} : vector<32x128xbf16>, vector<128x128xbf16>, vector<32x128xf32> -> vector<32x128xf32>
    %c0_9 = arith.constant 0 : index
    %c0_10 = arith.constant 0 : index
    %11 = vector.load %arg5[%c0_9, %c0_10] : memref<1x128xf32, #tpu.memory_space<vmem>>, vector<1x128xf32>
    %12 = vector.broadcast %11 : vector<1x128xf32> to vector<32x128xf32>
    %13 = arith.addf %10, %12 : vector<32x128xf32>
    %cst_11 = arith.constant 0.000000e+00 : f32
    %14 = vector.broadcast %cst_11 : f32 to vector<32x128xf32>
    %15 = arith.maximumf %13, %14 : vector<32x128xf32>
    %16 = arith.truncf %15 : vector<32x128xf32> to vector<32x128xbf16>
    %c0_12 = arith.constant 0 : index
    %c0_13 = arith.constant 0 : index
    %17 = vector.load %arg6[%c0_12, %c0_13] : memref<128x128xbf16, #tpu.memory_space<vmem>>, vector<128x128xbf16>
    %cst_14 = arith.constant dense<0.000000e+00> : vector<32x128xf32>
    %18 = tpu.matmul %16, %17, %cst_14 {dimension_numbers = #tpu.dot_dimension_numbers<[1], [0], [0], [1], [0, 0, 1, 1], [], []>} : vector<32x128xbf16>, vector<128x128xbf16>, vector<32x128xf32> -> vector<32x128xf32>
    %c0_15 = arith.constant 0 : index
    %c0_16 = arith.constant 0 : index
    %19 = vector.load %arg7[%c0_15, %c0_16] : memref<1x128xf32, #tpu.memory_space<vmem>>, vector<1x128xf32>
    %20 = vector.broadcast %19 : vector<1x128xf32> to vector<32x128xf32>
    %21 = arith.addf %18, %20 : vector<32x128xf32>
    %c0_17 = arith.constant 0 : index
    %c0_18 = arith.constant 0 : index
    %22 = vector.load %arg8[%c0_17, %c0_18] : memref<32x128xf32, #tpu.memory_space<vmem>>, vector<32x128xf32>
    tpu.vector_store %arg8[%c0_17, %c0_18], %21 {strides = array<i32>} : memref<32x128xf32, #tpu.memory_space<vmem>>, vector<32x128xf32>,
    return
  }
  func.func @transform_0(%arg0: i32) -> (i32, i32) {
    %c0_i32 = arith.constant 0 : i32
    %c0_i32_0 = arith.constant 0 : i32
    return %arg0, %c0_i32 : i32, i32
  }
  func.func @transform_1(%arg0: i32) -> (i32, i32) {
    %c0_i32 = arith.constant 0 : i32
    %c0_i32_0 = arith.constant 0 : i32
    %c0_i32_1 = arith.constant 0 : i32
    return %c0_i32, %c0_i32_0 : i32, i32
  }
  func.func @transform_2(%arg0: i32) -> (i32, i32) {
    %c0_i32 = arith.constant 0 : i32
    %c0_i32_0 = arith.constant 0 : i32
    %c0_i32_1 = arith.constant 0 : i32
    return %c0_i32, %c0_i32_0 : i32, i32
  }
  func.func @transform_3(%arg0: i32) -> (i32, i32) {
    %c0_i32 = arith.constant 0 : i32
    %c0_i32_0 = arith.constant 0 : i32
    %c0_i32_1 = arith.constant 0 : i32
    return %c0_i32, %c0_i32_0 : i32, i32
  }
  func.func @transform_4(%arg0: i32) -> (i32, i32) {
    %c0_i32 = arith.constant 0 : i32
    %c0_i32_0 = arith.constant 0 : i32
    %c0_i32_1 = arith.constant 0 : i32
    return %c0_i32, %c0_i32_0 : i32, i32
  }
  func.func @transform_5(%arg0: i32) -> (i32, i32) {
    %c0_i32 = arith.constant 0 : i32
    %c0_i32_0 = arith.constant 0 : i32
    %c0_i32_1 = arith.constant 0 : i32
    return %c0_i32, %c0_i32_0 : i32, i32
  }
  func.func @transform_6(%arg0: i32) -> (i32, i32) {
    %c0_i32 = arith.constant 0 : i32
    %c0_i32_0 = arith.constant 0 : i32
    %c0_i32_1 = arith.constant 0 : i32
    return %c0_i32, %c0_i32_0 : i32, i32
  }
  func.func @transform_7(%arg0: i32) -> (i32, i32) {
    %c0_i32 = arith.constant 0 : i32
    %c0_i32_0 = arith.constant 0 : i32
    return %arg0, %c0_i32 : i32, i32
  }
}

</mosaic_0001>

<llo_original>
// kernel: tpu_custom_call.1
$region0: #{tpu_custom_call.1}
  #allocation0 [shape = 'u32[]', space=smem, size = 0x4, offset = 0x4, fixed_abs, tag = 'smem constant byte address 0x4 - core index']
  #allocation1 [shape = 'u32[72,128]{1,0:T(1,128)}', space=vmem, size = 0x9000, scoped, tag = 'internal scratch']
  %s0 = inlined_call_operand.hbm [shape: bf16[64,128], index: 0, kind: input, shape index: {}]
  %s1 = inlined_call_operand.hbm [shape: bf16[128,128], index: 1, kind: input, shape index: {}]
  %s2 = inlined_call_operand.vmem [shape: f32[1,128], index: 2, kind: input, shape index: {}]
  %s3 = inlined_call_operand.hbm [shape: bf16[128,128], index: 3, kind: input, shape index: {}]
  %s4 = inlined_call_operand.vmem [shape: f32[1,128], index: 4, kind: input, shape index: {}]
  %s5 = inlined_call_operand.hbm [shape: bf16[128,128], index: 5, kind: input, shape index: {}]
  %s6 = inlined_call_operand.vmem [shape: f32[1,128], index: 6, kind: input, shape index: {}]
  %s7 = inlined_call_operand.hbm [shape: f32[64,128], index: 7, kind: output, shape index: {}]
  %s8 = sld [smem:[#allocation0]]
  $region77: #{tpu_custom_call.1} parent=0
    _
  %s10 = ssub.s32 1, %s8
  %s11 = scalar_select 0, %s10, %s8
  $region1: #{tpu_custom_call.1} parent=0
    #allocation2 [shape = 'u8[16384]{0}', space=vmem, size = 0x4000, scoped, tag = 'input window, operand 0']
    #allocation3 [shape = 's32[2]{0}', space=sflag, size = 0x8, scoped, tag = 'scoped memory for tpu_custom_call.1']
    #allocation4 [shape = 's32[2]{0}', space=sflag, size = 0x8, scoped, tag = 'scoped memory for tpu_custom_call.1']
    #allocation5 [shape = 'u8[32768]{0}', space=vmem, size = 0x8000, scoped, tag = 'input window, operand 1, single buffered']
    #allocation6 [shape = 's32[1]{0}', space=sflag, size = 0x4, scoped, tag = 'scoped memory for tpu_custom_call.1']
    #allocation7 [shape = 'u8[32768]{0}', space=vmem, size = 0x8000, scoped, tag = 'input window, operand 3, single buffered']
    #allocation8 [shape = 'u8[32768]{0}', space=vmem, size = 0x8000, scoped, tag = 'input window, operand 5, single buffered']
    #allocation9 [shape = 's32[1]{0}', space=sflag, size = 0x4, scoped, tag = 'scoped memory for tpu_custom_call.1']
    #allocation10 [shape = 'u8[32768]{0}', space=vmem, size = 0x8000, scoped, tag = 'output window, operand 0']
    %12 = vsyncpa [#allocation3], 0
    %s13 = scalar_lea.sflag [#allocation3], 1
    %14 = vsyncpa %s13, 0
    %15 = vsyncpa [#allocation6], 0
    %16 = vsyncpa [#allocation9], 0
    %17 = vsyncpa [#allocation4], 0
    %s18 = scalar_lea.sflag [#allocation4], 1
    %19 = vsyncpa %s18, 0
    loop: start=0, step=1, limit=4
    $region2: #{tpu_custom_call.1} parent=1 // loop_pre_header
      _
    $region3: #{tpu_custom_call.1} parent=1 // loop_header
      %s21 = sphi 0, %s25
      %p22 = scmp.ge.s32.totalorder %s21, 4
      %s31 = sphi 0, %s33
      %s34 = sphi 0, %s31
      %s35 = sphi 0, %s34
      %s51 = sphi 0, %s35
      %s55 = sphi 0, %s55
      %s57 = sphi 0, %s55
      %s58 = sphi 0, %s57
      %s72 = sphi 0, %s58
      %s76 = sphi 0, %s76
      %s78 = sphi 0, %s76
      %s79 = sphi 0, %s78
      %s93 = sphi 0, %s79
      %s97 = sphi 0, %s97
      %s99 = sphi 0, %s97
      %s100 = sphi 0, %s99
      %s114 = sphi 0, %s100
      %s118 = sphi 0, %s118
      %s120 = sphi 0, %s118
      %s121 = sphi 0, %s120
      %s135 = sphi 0, %s121
      %s139 = sphi 0, %s139
      %s141 = sphi 0, %s139
      %s142 = sphi 0, %s141
      %s156 = sphi 0, %s142
      %s160 = sphi 0, %s160
      %s162 = sphi 0, %s160
      %s163 = sphi 0, %s162
      %s177 = sphi 0, %s163
      %s183 = sphi 0, %s185
      %s186 = sphi 0, %s183
      %s187 = sphi 0, %s186
      %s203 = sphi 0, %s187
    $region4: #{tpu_custom_call.1} parent=1 // loop_header_branch
      %24 = sbr.rel (%p22) target = $region8
    $region5: #{tpu_custom_call.1} parent=1 // loop_body
      %s26 = ssub.s32 %s21, 1
      %s27 = ssub.s32 %s21, 2
      %s28 = sadd.s32 %s21, 1
      %s29 = ssub.s32 %s21, %s28
      %p30 = scmp.eq.s32.totalorder %s29, 0
      %s32 = sadd.s32 %s31, 1
      %s33 = scalar_select %p30, %s31, %s32
      %p36 = pneg %p30
      %p37 = scmp.eq.s32.totalorder %s21, 1
      %p38 = por %p36, %p37
      %p39 = scmp.ne.s32.totalorder %s31, %s34
      %p40 = scmp.eq.s32.totalorder %s21, 0
      %p41 = por %p39, %p40
      %p42 = scmp.ne.s32.totalorder %s31, %s34
      %p43 = scmp.eq.s32.totalorder %s26, 1
      %p44 = por %p42, %p43
      %p45 = scmp.ne.s32.totalorder %s34, %s35
      %p46 = scmp.eq.s32.totalorder %s26, 0
      %p47 = por %p45, %p46
      %p48 = scmp.ne.s32.totalorder %s34, %s35
      %p49 = scmp.eq.s32.totalorder %s27, 1
      %p50 = por %p48, %p49
      %p52 = scmp.ne.s32.totalorder %s35, %s51
      %p53 = scmp.eq.s32.totalorder %s27, 0
      %p54 = por %p52, %p53
      %s56 = sadd.s32 %s55, 1
      %p59 = scmp.eq.s32.totalorder %s21, 1
      %p60 = scmp.ne.s32.totalorder %s55, %s57
      %p61 = scmp.eq.s32.totalorder %s21, 0
      %p62 = por %p60, %p61
      %p63 = scmp.ne.s32.totalorder %s55, %s57
      %p64 = scmp.eq.s32.totalorder %s26, 1
      %p65 = por %p63, %p64
      %p66 = scmp.ne.s32.totalorder %s57, %s58
      %p67 = scmp.eq.s32.totalorder %s26, 0
      %p68 = por %p66, %p67
      %p69 = scmp.ne.s32.totalorder %s57, %s58
      %p70 = scmp.eq.s32.totalorder %s27, 1
      %p71 = por %p69, %p70
      %p73 = scmp.ne.s32.totalorder %s58, %s72
      %p74 = scmp.eq.s32.totalorder %s27, 0
      %p75 = por %p73, %p74
      %s77 = sadd.s32 %s76, 1
      %p80 = scmp.eq.s32.totalorder %s21, 1
      %p81 = scmp.ne.s32.totalorder %s76, %s78
      %p82 = scmp.eq.s32.totalorder %s21, 0
      %p83 = por %p81, %p82
      %p84 = scmp.ne.s32.totalorder %s76, %s78
      %p85 = scmp.eq.s32.totalorder %s26, 1
      %p86 = por %p84, %p85
      %p87 = scmp.ne.s32.totalorder %s78, %s79
      %p88 = scmp.eq.s32.totalorder %s26, 0
      %p89 = por %p87, %p88
      %p90 = scmp.ne.s32.totalorder %s78, %s79
      %p91 = scmp.eq.s32.totalorder %s27, 1
      %p92 = por %p90, %p91
      %p94 = scmp.ne.s32.totalorder %s79, %s93
      %p95 = scmp.eq.s32.totalorder %s27, 0
      %p96 = por %p94, %p95
      %s98 = sadd.s32 %s97, 1
      %p101 = scmp.eq.s32.totalorder %s21, 1
      %p102 = scmp.ne.s32.totalorder %s97, %s99
      %p103 = scmp.eq.s32.totalorder %s21, 0
      %p104 = por %p102, %p103
      %p105 = scmp.ne.s32.totalorder %s97, %s99
      %p106 = scmp.eq.s32.totalorder %s26, 1
      %p107 = por %p105, %p106
      %p108 = scmp.ne.s32.totalorder %s99, %s100
      %p109 = scmp.eq.s32.totalorder %s26, 0
      %p110 = por %p108, %p109
      %p111 = scmp.ne.s32.totalorder %s99, %s100
      %p112 = scmp.eq.s32.totalorder %s27, 1
      %p113 = por %p111, %p112
      %p115 = scmp.ne.s32.totalorder %s100, %s114
      %p116 = scmp.eq.s32.totalorder %s27, 0
      %p117 = por %p115, %p116
      %s119 = sadd.s32 %s118, 1
      %p122 = scmp.eq.s32.totalorder %s21, 1
      %p123 = scmp.ne.s32.totalorder %s118, %s120
      %p124 = scmp.eq.s32.totalorder %s21, 0
      %p125 = por %p123, %p124
      %p126 = scmp.ne.s32.totalorder %s118, %s120
      %p127 = scmp.eq.s32.totalorder %s26, 1
      %p128 = por %p126, %p127
      %p129 = scmp.ne.s32.totalorder %s120, %s121
      %p130 = scmp.eq.s32.totalorder %s26, 0
      %p131 = por %p129, %p130
      %p132 = scmp.ne.s32.totalorder %s120, %s121
      %p133 = scmp.eq.s32.totalorder %s27, 1
      %p134 = por %p132, %p133
      %p136 = scmp.ne.s32.totalorder %s121, %s135
      %p137 = scmp.eq.s32.totalorder %s27, 0
      %p138 = por %p136, %p137
      %s140 = sadd.s32 %s139, 1
      %p143 = scmp.eq.s32.totalorder %s21, 1
      %p144 = scmp.ne.s32.totalorder %s139, %s141
      %p145 = scmp.eq.s32.totalorder %s21, 0
      %p146 = por %p144, %p145
      %p147 = scmp.ne.s32.totalorder %s139, %s141
      %p148 = scmp.eq.s32.totalorder %s26, 1
      %p149 = por %p147, %p148
      %p150 = scmp.ne.s32.totalorder %s141, %s142
      %p151 = scmp.eq.s32.totalorder %s26, 0
      %p152 = por %p150, %p151
      %p153 = scmp.ne.s32.totalorder %s141, %s142
      %p154 = scmp.eq.s32.totalorder %s27, 1
      %p155 = por %p153, %p154
      %p157 = scmp.ne.s32.totalorder %s142, %s156
      %p158 = scmp.eq.s32.totalorder %s27, 0
      %p159 = por %p157, %p158
      %s161 = sadd.s32 %s160, 1
      %p164 = scmp.eq.s32.totalorder %s21, 1
      %p165 = scmp.ne.s32.totalorder %s160, %s162
      %p166 = scmp.eq.s32.totalorder %s21, 0
      %p167 = por %p165, %p166
      %p168 = scmp.ne.s32.totalorder %s160, %s162
      %p169 = scmp.eq.s32.totalorder %s26, 1
      %p170 = por %p168, %p169
      %p171 = scmp.ne.s32.totalorder %s162, %s163
      %p172 = scmp.eq.s32.totalorder %s26, 0
      %p173 = por %p171, %p172
      %p174 = scmp.ne.s32.totalorder %s162, %s163
      %p175 = scmp.eq.s32.totalorder %s27, 1
      %p176 = por %p174, %p175
      %p178 = scmp.ne.s32.totalorder %s163, %s177
      %p179 = scmp.eq.s32.totalorder %s27, 0
      %p180 = por %p178, %p179
      %s181 = ssub.s32 %s21, %s28
      %p182 = scmp.eq.s32.totalorder %s181, 0
      %s184 = sadd.s32 %s183, 1
      %s185 = scalar_select %p182, %s183, %s184
      %p188 = pneg %p182
      %p189 = scmp.eq.s32.totalorder %s21, 1
      %p190 = por %p188, %p189
      %p191 = scmp.ne.s32.totalorder %s183, %s186
      %p192 = scmp.eq.s32.totalorder %s21, 0
      %p193 = por %p191, %p192
      %p194 = scmp.ne.s32.totalorder %s183, %s186
      %p195 = scmp.eq.s32.totalorder %s26, 1
      %p196 = por %p194, %p195
      %p197 = scmp.ne.s32.totalorder %s186, %s187
      %p198 = scmp.eq.s32.totalorder %s26, 0
      %p199 = por %p197, %p198
      %p200 = scmp.ne.s32.totalorder %s186, %s187
      %p201 = scmp.eq.s32.totalorder %s27, 1
      %p202 = por %p200, %p201
      %p204 = scmp.ne.s32.totalorder %s187, %s203
      %p205 = scmp.eq.s32.totalorder %s27, 0
      %p206 = por %p204, %p205
      %p207 = scmp.le.s32.totalorder 1, %s21
      %p208 = scmp.lt.s32.totalorder %s21, 3
      %p209 = pnand %p207, %p208
      %p210 = pneg %p209
      // Predicated region
      $region9: #{tpu_custom_call.1} parent=5 // pred_check
        _
      $region10: #{tpu_custom_call.1} parent=5 // pred_check_branch
        %212 = sbr.rel (%p209) target = $region12
      $region11: #{tpu_custom_call.1} parent=5 // pred_region
        %s213 = ssub.s32 %s21, 1
        // Predicated region
        $region13: #{tpu_custom_call.1} parent=11 // pred_check
          %p214 = pneg %p68
        $region14: #{tpu_custom_call.1} parent=11 // pred_check_branch
          %216 = sbr.rel (%p214) target = $region16
        $region15: #{tpu_custom_call.1} parent=11 // pred_region
          %218 = vsyncadd [#allocation6], 0
          %s219 = sshll.u32 %s1, 4
          %s220 = int_to_ptr.hbm [resolvable:$true] %s219
          %s221 = sshll.u32 [#allocation5], 4
          %s222 = int_to_ptr.vmem [resolvable:$true] %s221
          %227 = dma.hbm_to_vmem [thread:$0]  %s220, 1024, %s222, [#allocation6], 64, 64, 4
        $region16: #{tpu_custom_call.1} parent=11 // pred_fallthru
          _
        // Predicated region
        $region17: #{tpu_custom_call.1} parent=11 // pred_check
          %p228 = pneg %p89
        $region18: #{tpu_custom_call.1} parent=11 // pred_check_branch
          %230 = sbr.rel (%p228) target = $region20
        $region19: #{tpu_custom_call.1} parent=11 // pred_region
          _
        $region20: #{tpu_custom_call.1} parent=11 // pred_fallthru
          _
        // Predicated region
        $region21: #{tpu_custom_call.1} parent=11 // pred_check
          %p231 = pneg %p110
        $region22: #{tpu_custom_call.1} parent=11 // pred_check_branch
          %233 = sbr.rel (%p231) target = $region24
        $region23: #{tpu_custom_call.1} parent=11 // pred_region
          %235 = vsyncadd [#allocation6], 0
          %s236 = sshll.u32 %s3, 4
          %s237 = int_to_ptr.hbm [resolvable:$true] %s236
          %s238 = sshll.u32 [#allocation7], 4
          %s239 = int_to_ptr.vmem [resolvable:$true] %s238
          %244 = dma.hbm_to_vmem [thread:$0]  %s237, 1024, %s239, [#allocation6], 64, 64, 4
        $region24: #{tpu_custom_call.1} parent=11 // pred_fallthru
          _
        // Predicated region
        $region25: #{tpu_custom_call.1} parent=11 // pred_check
          %p245 = pneg %p131
        $region26: #{tpu_custom_call.1} parent=11 // pred_check_branch
          %247 = sbr.rel (%p245) target = $region28
        $region27: #{tpu_custom_call.1} parent=11 // pred_region
          _
        $region28: #{tpu_custom_call.1} parent=11 // pred_fallthru
          _
        // Predicated region
        $region29: #{tpu_custom_call.1} parent=11 // pred_check
          %p248 = pneg %p152
        $region30: #{tpu_custom_call.1} parent=11 // pred_check_branch
          %250 = sbr.rel (%p248) target = $region32
        $region31: #{tpu_custom_call.1} parent=11 // pred_region
          %252 = vsyncadd [#allocation9], 0
          %s253 = sshll.u32 %s5, 4
          %s254 = int_to_ptr.hbm [resolvable:$true] %s253
          %s255 = sshll.u32 [#allocation8], 4
          %s256 = int_to_ptr.vmem [resolvable:$true] %s255
          %261 = dma.hbm_to_vmem [thread:$0]  %s254, 1024, %s256, [#allocation9], 64, 64, 4
        $region32: #{tpu_custom_call.1} parent=11 // pred_fallthru
          _
        // Predicated region
        $region33: #{tpu_custom_call.1} parent=11 // pred_check
          %p262 = pneg %p173
        $region34: #{tpu_custom_call.1} parent=11 // pred_check_branch
          %264 = sbr.rel (%p262) target = $region36
        $region35: #{tpu_custom_call.1} parent=11 // pred_region
          _
        $region36: #{tpu_custom_call.1} parent=11 // pred_fallthru
          _
      $region12: #{tpu_custom_call.1} parent=5 // pred_fallthru
        _
      %p265 = scmp.lt.s32.totalorder %s21, 2
      // Predicated region
      $region37: #{tpu_custom_call.1} parent=5 // pred_check
        %p266 = pneg %p265
      $region38: #{tpu_custom_call.1} parent=5 // pred_check_branch
        %268 = sbr.rel (%p266) target = $region40
      $region39: #{tpu_custom_call.1} parent=5 // pred_region
        // Predicated region
        $region41: #{tpu_custom_call.1} parent=39 // pred_check
          %p269 = pneg %p41
        $region42: #{tpu_custom_call.1} parent=39 // pred_check_branch
          %271 = sbr.rel (%p269) target = $region44
        $region43: #{tpu_custom_call.1} parent=39 // pred_region
          %s272 = sand.u32 %s31, 1
          %s273 = scalar_lea.sflag [#allocation3], %s272
          %s274 = sand.u32 %s31, 1
          %s275 = smul.addr %s274, 16
          %s276 = scalar_lea.vmem [#allocation2], %s275
          %s277 = smul.u32 4, %s21
          %279 = vsyncadd %s273, 0
          %s280 = smul.addr %s277, 4
          %s281 = scalar_lea.hbm %s0, %s280
          %s282 = sshll.u32 %s281, 4
          %s283 = int_to_ptr.hbm [resolvable:$true] %s282
          %s284 = sshll.u32 %s276, 4
          %s285 = int_to_ptr.vmem [resolvable:$true] %s284
          %290 = dma.hbm_to_vmem [thread:$0]  %s283, 256, %s285, %s273, 64, 64, 4
        $region44: #{tpu_custom_call.1} parent=39 // pred_fallthru
          _
      $region40: #{tpu_custom_call.1} parent=5 // pred_fallthru
        _
      %p291 = scmp.le.s32.totalorder 1, %s21
      %p292 = scmp.lt.s32.totalorder %s21, 3
      %p293 = pnand %p291, %p292
      %p294 = pneg %p293
      // Predicated region
      $region45: #{tpu_custom_call.1} parent=5 // pred_check
        _
      $region46: #{tpu_custom_call.1} parent=5 // pred_check_branch
        %296 = sbr.rel (%p293) target = $region48
      $region47: #{tpu_custom_call.1} parent=5 // pred_region
        %s297 = ssub.s32 %s21, 1
        %s298 = sand.u32 %s34, 1
        %s299 = scalar_lea.sflag [#allocation3], %s298
        %s300 = sand.u32 %s34, 1
        %s301 = smul.addr %s300, 16
        %s302 = scalar_lea.vmem [#allocation2], %s301
        // Predicated region
        $region49: #{tpu_custom_call.1} parent=47 // pred_check
          %p303 = pneg %p47
        $region50: #{tpu_custom_call.1} parent=47 // pred_check_branch
          %305 = sbr.rel (%p303) target = $region52
        $region51: #{tpu_custom_call.1} parent=47 // pred_region
          %307 = dma.done %s299, 256
        $region52: #{tpu_custom_call.1} parent=47 // pred_fallthru
          _
        // Predicated region
        $region53: #{tpu_custom_call.1} parent=47 // pred_check
          %p308 = pneg %p68
        $region54: #{tpu_custom_call.1} parent=47 // pred_check_branch
          %310 = sbr.rel (%p308) target = $region56
        $region55: #{tpu_custom_call.1} parent=47 // pred_region
          %312 = dma.done [#allocation6], 1024
        $region56: #{tpu_custom_call.1} parent=47 // pred_fallthru
          _
        // Predicated region
        $region57: #{tpu_custom_call.1} parent=47 // pred_check
          %p313 = pneg %p110
        $region58: #{tpu_custom_call.1} parent=47 // pred_check_branch
          %315 = sbr.rel (%p313) target = $region60
        $region59: #{tpu_custom_call.1} parent=47 // pred_region
          %317 = dma.done [#allocation6], 1024
        $region60: #{tpu_custom_call.1} parent=47 // pred_fallthru
          _
        // Predicated region
        $region61: #{tpu_custom_call.1} parent=47 // pred_check
          %p318 = pneg %p152
        $region62: #{tpu_custom_call.1} parent=47 // pred_check_branch
          %320 = sbr.rel (%p318) target = $region64
        $region63: #{tpu_custom_call.1} parent=47 // pred_region
          %322 = dma.done [#allocation9], 1024
        $region64: #{tpu_custom_call.1} parent=47 // pred_fallthru
          _
        %s323 = sand.u32 %s34, 1
        %s324 = scalar_lea.sflag [#allocation3], %s323
        %s325 = sand.u32 %s34, 1
        %s326 = smul.addr %s325, 16
        %s327 = scalar_lea.vmem [#allocation2], %s326
        %p328 = pneg %p47
        %p329 = pneg %p44
        %p330 = pneg %p68
        %p331 = pneg %p65
        %p332 = pneg %p89
        %p333 = pneg %p86
        %p334 = pneg %p110
        %p335 = pneg %p107
        %p336 = pneg %p131
        %p337 = pneg %p128
        %p338 = pneg %p152
        %p339 = pneg %p149
        %p340 = pneg %p173
        %p341 = pneg %p170
        %p342 = pneg %p199
        %p343 = pneg %p196
        %s344 = sand.u32 %s186, 1
        %s345 = scalar_lea.sflag [#allocation4], %s344
        %s346 = sand.u32 %s186, 1
        %s347 = smul.addr %s346, 32
        %s348 = scalar_lea.vmem [#allocation10], %s347
        %s349 = smul.u32 4, %s26
        %s350 = smul.u32 4, %s26
        %v351 = vld [vmem:[%s302] sm:$0xf]
        %v352 = vld [vmem:[%s302 + $0x4] sm:$0xf]
        %v353 = vld [vmem:[%s302 + $0x8] sm:$0xf]
        %v354 = vld [vmem:[%s302 + $0xc] sm:$0xf]
        %v355 = vld [vmem:[#allocation5] sm:$0xf]
        %v356 = vld [vmem:[#allocation5 + $0x4] sm:$0xf]
        %v357 = vld [vmem:[#allocation5 + $0x8] sm:$0xf]
        %v358 = vld [vmem:[#allocation5 + $0xc] sm:$0xf]
        %v359 = vld [vmem:[#allocation5 + $0x10] sm:$0xf]
        %v360 = vld [vmem:[#allocation5 + $0x14] sm:$0xf]
        %v361 = vld [vmem:[#allocation5 + $0x18] sm:$0xf]
        %v362 = vld [vmem:[#allocation5 + $0x1c] sm:$0xf]
        %v363 = vld [vmem:[#allocation5 + $0x20] sm:$0xf]
        %v364 = vld [vmem:[#allocation5 + $0x24] sm:$0xf]
        %v365 = vld [vmem:[#allocation5 + $0x28] sm:$0xf]
        %v366 = vld [vmem:[#allocation5 + $0x2c] sm:$0xf]
        %v367 = vld [vmem:[#allocation5 + $0x30] sm:$0xf]
        %v368 = vld [vmem:[#allocation5 + $0x34] sm:$0xf]
        %v369 = vld [vmem:[#allocation5 + $0x38] sm:$0xf]
        %v370 = vld [vmem:[#allocation5 + $0x3c] sm:$0xf]
        %v371 = vld [vmem:[%s2] sm:$0x1]
        %v373 = vperm.slane %v371, 0
        %v379 = vunpack.c.l.b16 %v351
        %v380 = vunpack.c.l.b16 %v352
        %v381 = vunpack.c.l.b16 %v353
        %v382 = vunpack.c.l.b16 %v354
        %v383 = vpack.c.b16 %v380, %v379
        %v384 = vpack.c.b16 %v382, %v381
        %v403 = vunpack.c.l.b16 %v355
        %v404 = vunpack.c.l.b16 %v356
        %v405 = vunpack.c.l.b16 %v357
        %v406 = vunpack.c.l.b16 %v358
        %v407 = vunpack.c.l.b16 %v359
        %v408 = vunpack.c.l.b16 %v360
        %v409 = vunpack.c.l.b16 %v361
        %v410 = vunpack.c.l.b16 %v362
        %v411 = vunpack.c.l.b16 %v363
        %v412 = vunpack.c.l.b16 %v364
        %v413 = vunpack.c.l.b16 %v365
        %v414 = vunpack.c.l.b16 %v366
        %v415 = vunpack.c.l.b16 %v367
        %v416 = vunpack.c.l.b16 %v368
        %v417 = vunpack.c.l.b16 %v369
        %v418 = vunpack.c.l.b16 %v370
        %v419 = vpack.c.b16 %v404, %v403
        %v420 = vpack.c.b16 %v406, %v405
        %v421 = vpack.c.b16 %v408, %v407
        %v422 = vpack.c.b16 %v410, %v409
        %v423 = vpack.c.b16 %v412, %v411
        %v424 = vpack.c.b16 %v414, %v413
        %v425 = vpack.c.b16 %v416, %v415
        %v426 = vpack.c.b16 %v418, %v417
        %435 = vmatpush.bf16.msra.mxu0 %v426
        %436 = vmatpush.bf16.msra.mxu0 %v425
        %437 = vmatpush.bf16.msra.mxu0 %v424
        %438 = vmatpush.bf16.msra.mxu0 %v423
        %439 = vmatpush.bf16.msra.mxu0 %v422
        %440 = vmatpush.bf16.msra.mxu0 %v421
        %441 = vmatpush.bf16.msra.mxu0 %v420
        %442 = vmatpush.bf16.msra.mxu0 %v419
        %443 = vmatmul.bf16.gmra.mxu0 %v383
        %v444 = vpop.f32.mrf.mxu0
        %v445 = vadd.f32 %v373, %v444
        %v446 = vpop.f32.mrf.mxu0
        %v447 = vadd.f32 %v373, %v446
        %448 = vmatmul.bf16.gmra.mxu0 %v384
        %v449 = vpop.f32.mrf.mxu0
        %v450 = vadd.f32 %v373, %v449
        %v451 = vpop.f32.mrf.mxu0
        %v452 = vadd.f32 %v373, %v451
        %453 = vdwg.mxu0
        %v454 = vmax.f32 %v445, 0.0
        %v455 = vmax.f32 %v447, 0.0
        %v456 = vmax.f32 %v450, 0.0
        %v457 = vmax.f32 %v452, 0.0
        %v458 = vpack.c.bf16 %v455, %v454
        %v459 = vpack.c.bf16 %v457, %v456
        %v460 = vld [vmem:[#allocation7] sm:$0xf]
        %v461 = vld [vmem:[#allocation7 + $0x4] sm:$0xf]
        %v462 = vld [vmem:[#allocation7 + $0x8] sm:$0xf]
        %v463 = vld [vmem:[#allocation7 + $0xc] sm:$0xf]
        %v464 = vld [vmem:[#allocation7 + $0x10] sm:$0xf]
        %v465 = vld [vmem:[#allocation7 + $0x14] sm:$0xf]
        %v466 = vld [vmem:[#allocation7 + $0x18] sm:$0xf]
        %v467 = vld [vmem:[#allocation7 + $0x1c] sm:$0xf]
        %v468 = vld [vmem:[#allocation7 + $0x20] sm:$0xf]
        %v469 = vld [vmem:[#allocation7 + $0x24] sm:$0xf]
        %v470 = vld [vmem:[#allocation7 + $0x28] sm:$0xf]
        %v471 = vld [vmem:[#allocation7 + $0x2c] sm:$0xf]
        %v472 = vld [vmem:[#allocation7 + $0x30] sm:$0xf]
        %v473 = vld [vmem:[#allocation7 + $0x34] sm:$0xf]
        %v474 = vld [vmem:[#allocation7 + $0x38] sm:$0xf]
        %v475 = vld [vmem:[#allocation7 + $0x3c] sm:$0xf]
        %v476 = vld [vmem:[%s4] sm:$0x1]
        %v478 = vperm.slane %v476, 0
        %v496 = vunpack.c.l.b16 %v460
        %v497 = vunpack.c.l.b16 %v461
        %v498 = vunpack.c.l.b16 %v462
        %v499 = vunpack.c.l.b16 %v463
        %v500 = vunpack.c.l.b16 %v464
        %v501 = vunpack.c.l.b16 %v465
        %v502 = vunpack.c.l.b16 %v466
        %v503 = vunpack.c.l.b16 %v467
        %v504 = vunpack.c.l.b16 %v468
        %v505 = vunpack.c.l.b16 %v469
        %v506 = vunpack.c.l.b16 %v470
        %v507 = vunpack.c.l.b16 %v471
        %v508 = vunpack.c.l.b16 %v472
        %v509 = vunpack.c.l.b16 %v473
        %v510 = vunpack.c.l.b16 %v474
        %v511 = vunpack.c.l.b16 %v475
        %v512 = vpack.c.b16 %v497, %v496
        %v513 = vpack.c.b16 %v499, %v498
        %v514 = vpack.c.b16 %v501, %v500
        %v515 = vpack.c.b16 %v503, %v502
        %v516 = vpack.c.b16 %v505, %v504
        %v517 = vpack.c.b16 %v507, %v506
        %v518 = vpack.c.b16 %v509, %v508
        %v519 = vpack.c.b16 %v511, %v510
        %528 = vmatpush.bf16.msra.mxu0 %v519
        %529 = vmatpush.bf16.msra.mxu0 %v518
        %530 = vmatpush.bf16.msra.mxu0 %v517
        %531 = vmatpush.bf16.msra.mxu0 %v516
        %532 = vmatpush.bf16.msra.mxu0 %v515
        %533 = vmatpush.bf16.msra.mxu0 %v514
        %534 = vmatpush.bf16.msra.mxu0 %v513
        %535 = vmatpush.bf16.msra.mxu0 %v512
        %536 = vmatmul.bf16.gmra.mxu0 %v458
        %v537 = vpop.f32.mrf.mxu0
        %v538 = vadd.f32 %v478, %v537
        %v539 = vpop.f32.mrf.mxu0
        %v540 = vadd.f32 %v478, %v539
        %541 = vmatmul.bf16.gmra.mxu0 %v459
        %v542 = vpop.f32.mrf.mxu0
        %v543 = vadd.f32 %v478, %v542
        %v544 = vpop.f32.mrf.mxu0
        %v545 = vadd.f32 %v478, %v544
        %546 = vdwg.mxu0
        %v547 = vmax.f32 %v538, 0.0
        %v548 = vmax.f32 %v540, 0.0
        %v549 = vmax.f32 %v543, 0.0
        %v550 = vmax.f32 %v545, 0.0
        %v551 = vpack.c.bf16 %v548, %v547
        %v552 = vpack.c.bf16 %v550, %v549
        %v553 = vld [vmem:[#allocation8] sm:$0xf]
        %v554 = vld [vmem:[#allocation8 + $0x4] sm:$0xf]
        %v555 = vld [vmem:[#allocation8 + $0x8] sm:$0xf]
        %v556 = vld [vmem:[#allocation8 + $0xc] sm:$0xf]
        %v557 = vld [vmem:[#allocation8 + $0x10] sm:$0xf]
        %v558 = vld [vmem:[#allocation8 + $0x14] sm:$0xf]
        %v559 = vld [vmem:[#allocation8 + $0x18] sm:$0xf]
        %v560 = vld [vmem:[#allocation8 + $0x1c] sm:$0xf]
        %v561 = vld [vmem:[#allocation8 + $0x20] sm:$0xf]
        %v562 = vld [vmem:[#allocation8 + $0x24] sm:$0xf]
        %v563 = vld [vmem:[#allocation8 + $0x28] sm:$0xf]
        %v564 = vld [vmem:[#allocation8 + $0x2c] sm:$0xf]
        %v565 = vld [vmem:[#allocation8 + $0x30] sm:$0xf]
        %v566 = vld [vmem:[#allocation8 + $0x34] sm:$0xf]
        %v567 = vld [vmem:[#allocation8 + $0x38] sm:$0xf]
        %v568 = vld [vmem:[#allocation8 + $0x3c] sm:$0xf]
        %v569 = vld [vmem:[%s6] sm:$0x1]
        %v571 = vperm.slane %v569, 0
        %v589 = vunpack.c.l.b16 %v553
        %v590 = vunpack.c.l.b16 %v554
        %v591 = vunpack.c.l.b16 %v555
        %v592 = vunpack.c.l.b16 %v556
        %v593 = vunpack.c.l.b16 %v557
        %v594 = vunpack.c.l.b16 %v558
        %v595 = vunpack.c.l.b16 %v559
        %v596 = vunpack.c.l.b16 %v560
        %v597 = vunpack.c.l.b16 %v561
        %v598 = vunpack.c.l.b16 %v562
        %v599 = vunpack.c.l.b16 %v563
        %v600 = vunpack.c.l.b16 %v564
        %v601 = vunpack.c.l.b16 %v565
        %v602 = vunpack.c.l.b16 %v566
        %v603 = vunpack.c.l.b16 %v567
        %v604 = vunpack.c.l.b16 %v568
        %v605 = vpack.c.b16 %v590, %v589
        %v606 = vpack.c.b16 %v592, %v591
        %v607 = vpack.c.b16 %v594, %v593
        %v608 = vpack.c.b16 %v596, %v595
        %v609 = vpack.c.b16 %v598, %v597
        %v610 = vpack.c.b16 %v600, %v599
        %v611 = vpack.c.b16 %v602, %v601
        %v612 = vpack.c.b16 %v604, %v603
        %621 = vmatpush.bf16.msra.mxu0 %v612
        %622 = vmatpush.bf16.msra.mxu0 %v611
        %623 = vmatpush.bf16.msra.mxu0 %v610
        %624 = vmatpush.bf16.msra.mxu0 %v609
        %625 = vmatpush.bf16.msra.mxu0 %v608
        %626 = vmatpush.bf16.msra.mxu0 %v607
        %627 = vmatpush.bf16.msra.mxu0 %v606
        %628 = vmatpush.bf16.msra.mxu0 %v605
        %629 = vmatmul.bf16.gmra.mxu0 %v551
        %v630 = vpop.f32.mrf.mxu0
        %v631 = vadd.f32 %v571, %v630
        %v632 = vpop.f32.mrf.mxu0
        %v633 = vadd.f32 %v571, %v632
        %634 = vmatmul.bf16.gmra.mxu0 %v552
        %v635 = vpop.f32.mrf.mxu0
        %v636 = vadd.f32 %v571, %v635
        %v637 = vpop.f32.mrf.mxu0
        %v638 = vadd.f32 %v571, %v637
        %639 = vdwg.mxu0
        %640 = vst [vmem:[%s348] sm:$0xff] %v631
        %641 = vst [vmem:[%s348 + $0x8] sm:$0xff] %v633
        %642 = vst [vmem:[%s348 + $0x10] sm:$0xff] %v636
        %643 = vst [vmem:[%s348 + $0x18] sm:$0xff] %v638
        %s644 = sand.u32 %s186, 1
        %s645 = scalar_lea.sflag [#allocation4], %s644
        %s646 = sand.u32 %s186, 1
        %s647 = smul.addr %s646, 32
        %s648 = scalar_lea.vmem [#allocation10], %s647
        // Predicated region
        $region65: #{tpu_custom_call.1} parent=47 // pred_check
          %p649 = pneg %p196
        $region66: #{tpu_custom_call.1} parent=47 // pred_check_branch
          %651 = sbr.rel (%p649) target = $region68
        $region67: #{tpu_custom_call.1} parent=47 // pred_region
          %s652 = smul.u32 4, %s26
          %654 = vsyncadd %s645, 0
          %s655 = smul.addr %s652, 8
          %s656 = scalar_lea.hbm %s7, %s655
          %s657 = sshll.u32 %s648, 4
          %s658 = int_to_ptr.vmem [resolvable:$true] %s657
          %s659 = sshll.u32 %s656, 4
          %s660 = int_to_ptr.hbm [resolvable:$true] %s659
          %665 = dma.vmem_to_hbm [thread:$0]  %s658, 512, %s660, %s645, 128, 128, 8
        $region68: #{tpu_custom_call.1} parent=47 // pred_fallthru
          _
      $region48: #{tpu_custom_call.1} parent=5 // pred_fallthru
        _
      %p666 = scmp.le.s32.totalorder 2, %s21
      // Predicated region
      $region69: #{tpu_custom_call.1} parent=5 // pred_check
        %p667 = pneg %p666
      $region70: #{tpu_custom_call.1} parent=5 // pred_check_branch
        %669 = sbr.rel (%p667) target = $region72
      $region71: #{tpu_custom_call.1} parent=5 // pred_region
        %s670 = ssub.s32 %s21, 2
        // Predicated region
        $region73: #{tpu_custom_call.1} parent=71 // pred_check
          %p671 = pneg %p202
        $region74: #{tpu_custom_call.1} parent=71 // pred_check_branch
          %673 = sbr.rel (%p671) target = $region76
        $region75: #{tpu_custom_call.1} parent=71 // pred_region
          %s674 = sand.u32 %s187, 1
          %s675 = scalar_lea.sflag [#allocation4], %s674
          %s676 = sand.u32 %s187, 1
          %s677 = smul.addr %s676, 32
          %s678 = scalar_lea.vmem [#allocation10], %s677
          %680 = dma.done %s675, 512
        $region76: #{tpu_custom_call.1} parent=71 // pred_fallthru
          _
      $region72: #{tpu_custom_call.1} parent=5 // pred_fallthru
        _
    $region6: #{tpu_custom_call.1} parent=1 // loop_footer
      %s25 = sadd.s32 1, %s21
    $region7: #{tpu_custom_call.1} parent=1 // loop_footer_branch
      %20 = sbr.rel target = $region3
    $region8: #{tpu_custom_call.1} parent=1 // loop_exit
      _
    %681 = vsyncpa [#allocation3], 1
    %s682 = scalar_lea.sflag [#allocation3], 1
    %683 = vsyncpa %s682, 1
    %684 = vsyncpa [#allocation6], 1
    %685 = vsyncpa [#allocation9], 1
    %686 = vsyncpa [#allocation4], 1
    %s687 = scalar_lea.sflag [#allocation4], 1
    %688 = vsyncpa %s687, 1

</llo_original>
